<compile_context>
chip_gen: v5e
topology: v5e:2x2
jax: 0.10.0
libtpu: 0.0.40
codegen_flags: <defaults>
</compile_context>

<pallas_src>
import functools

import numpy as np
import jax
import jax.numpy as jnp
from jax import lax
from jax.experimental import pallas as pl
from jax.experimental.pallas import tpu as pltpu

N_HEAD = 5   # proposal-head outputs: dx1, dy1, dx2, dy2, score_logit
F_OUT = 8    # padded sublane count of the proposal output: 4 box + score + valid + 2 pad


def _pick_tile(n, candidates):
    """Largest candidate tile that divides n, else the full extent."""
    for t in candidates:
        if t <= n and n % t == 0:
            return t
    return n


# ----------------------------------------------------------------------------
# Kernel 1: proposal head  (linear head -> anchor decode -> clip -> filters)
#   Everything lane-dense: pixels on the lane axis, coordinates on sublanes.
# ----------------------------------------------------------------------------
def _proposal_kernel(x_ref, anch_ref, w_ref, b_ref, out_ref, *,
                     img_h, img_w, min_size, score_threshold, delta_scale):
    x = x_ref[0]                                   # (C, TH): pixels on lanes
    c_dim = x.shape[0]

    # 5 logit rows via unrolled VPU FMAs (w, b are scalars in SMEM).  A
    # (HW x 4) @ (4 x 5) MXU matmul would waste the systolic array entirely.
    logits = []
    for f in range(N_HEAD):
        acc = x[0:1, :] * w_ref[f, 0]
        for c in range(1, c_dim):
            acc = acc + x[c:c + 1, :] * w_ref[f, c]
        logits.append(acc + b_ref[f])
    dx1, dy1, dx2, dy2, slog = logits

    d1 = jnp.tanh(dx1) * delta_scale               # bounded box deltas (EUP tanh)
    d2 = jnp.tanh(dy1) * delta_scale
    d3 = jnp.tanh(dx2) * delta_scale
    d4 = jnp.tanh(dy2) * delta_scale

    ax1 = anch_ref[0:1, :]
    ay1 = anch_ref[1:2, :]
    ax2 = anch_ref[2:3, :]
    ay2 = anch_ref[3:4, :]

    # torchvision clip_boxes_to_image clips to [0, W] / [0, H]
    x1 = jnp.clip(ax1 + d1, 0.0, img_w)
    y1 = jnp.clip(ay1 + d2, 0.0, img_h)
    x2 = jnp.clip(ax2 + d3, 0.0, img_w)
    y2 = jnp.clip(ay2 + d4, 0.0, img_h)

    lo_x = jnp.minimum(x1, x2)
    hi_x = jnp.maximum(x1, x2)
    lo_y = jnp.minimum(y1, y2)
    hi_y = jnp.maximum(y1, y2)

    score = 1.0 / (1.0 + jnp.exp(-slog))           # sigmoid (exp on EUP)

    # torchvision remove_small_boxes + box_score_thresh semantics
    w_box = hi_x - lo_x
    h_box = hi_y - lo_y
    valid = jnp.where((w_box >= min_size) & (h_box >= min_size)
                      & (score >= score_threshold), 1.0, 0.0)

    # Row-wise unmasked stores (lane-dense); no lane-axis concatenate.
    out_ref[0, 0:1, :] = lo_x
    out_ref[0, 1:2, :] = lo_y
    out_ref[0, 2:3, :] = hi_x
    out_ref[0, 3:4, :] = hi_y
    out_ref[0, 4:5, :] = score
    out_ref[0, 5:6, :] = valid
    out_ref[0, 6:8, :] = jnp.zeros((2, lo_x.shape[1]), jnp.float32)


def proposal_head(x_nchw, w, b, anchors, *, min_size, score_threshold,
                  delta_scale=3.0):
    B, C, H, W = x_nchw.shape
    HW = H * W
    # NCHW -> (B, C, HW): channels on sublanes, pixels on the lane axis.
    # This is a pure reshape (no transpose / extra HBM copy).
    xf = x_nchw.reshape(B, C, HW)

    TH = _pick_tile(HW, (4096, 2048, 1024, 512, 256, 128))
    kern = functools.partial(
        _proposal_kernel,
        img_h=float(H), img_w=float(W),
        min_size=float(min_size), score_threshold=float(score_threshold),
        delta_scale=float(delta_scale))

    out = pl.pallas_call(
        kern,
        out_shape=jax.ShapeDtypeStruct((B, F_OUT, HW), jnp.float32),
        grid=(B, HW // TH),
        in_specs=[
            pl.BlockSpec((1, C, TH), lambda bi, t: (bi, 0, t)),
            pl.BlockSpec((4, TH), lambda bi, t: (0, t)),
            pl.BlockSpec(memory_space=pltpu.MemorySpace.SMEM),   # w  (N_HEAD, C)
            pl.BlockSpec(memory_space=pltpu.MemorySpace.SMEM),   # b  (N_HEAD,)
        ],
        out_specs=pl.BlockSpec((1, F_OUT, TH), lambda bi, t: (bi, 0, t)),
        compiler_params=pltpu.CompilerParams(
            dimension_semantics=("parallel", "parallel")),
    )(xf, anchors, w, b)

    boxes_cm = out[:, 0:4, :]     # (B, 4, HW) coord-major, lane-dense
    scores = out[:, 4, :]         # (B, HW)
    valid = out[:, 5, :]          # (B, HW) float mask
    return boxes_cm, scores, valid


# ----------------------------------------------------------------------------
# Kernel 2: pairwise IoU matrix, tiled over both box axes.
#   Column boxes stay coord-major (lane-dense); row boxes are a tiny (TN, 4)
#   box-major tile (2 KB/step, negligible vs the (TN, TN) output tile).
# ----------------------------------------------------------------------------
def _iou_kernel(rows_ref, cols_ref, iou_ref):
    r = rows_ref[0]      # (TN, 4) row-tile boxes
    c = cols_ref[0]      # (4, TN) col-tile boxes, lane-dense

    x1 = r[:, 0:1]; y1 = r[:, 1:2]; x2 = r[:, 2:3]; y2 = r[:, 3:4]        # (TN, 1)
    x1t = c[0:1, :]; y1t = c[1:2, :]; x2t = c[2:3, :]; y2t = c[3:4, :]    # (1, TN)

    area = (x2 - x1) * (y2 - y1)
    area_t = (x2t - x1t) * (y2t - y1t)

    xx1 = jnp.maximum(x1, x1t)
    yy1 = jnp.maximum(y1, y1t)
    xx2 = jnp.minimum(x2, x2t)
    yy2 = jnp.minimum(y2, y2t)

    iw = jnp.maximum(xx2 - xx1, 0.0)
    ih = jnp.maximum(yy2 - yy1, 0.0)
    inter = iw * ih
    union = area + area_t - inter
    # approximate reciprocal runs on the otherwise-idle EUP slot
    iou_ref[0] = inter * pl.reciprocal(jnp.maximum(union, 1e-6), approx=True)


def pairwise_iou(boxes_rm, boxes_cm):
    """boxes_rm: (B, N, 4) box-major;  boxes_cm: (B, 4, N) coord-major."""
    B, N, _ = boxes_rm.shape
    TN = _pick_tile(N, (512, 256, 128))
    nt = N // TN
    return pl.pallas_call(
        _iou_kernel,
        out_shape=jax.ShapeDtypeStruct((B, N, N), jnp.float32),
        grid=(B, nt, nt),
        in_specs=[
            pl.BlockSpec((1, TN, 4), lambda bi, i, j: (bi, i, 0)),
            pl.BlockSpec((1, 4, TN), lambda bi, i, j: (bi, 0, j)),
        ],
        out_specs=pl.BlockSpec((1, TN, TN), lambda bi, i, j: (bi, i, j)),
        compiler_params=pltpu.CompilerParams(
            dimension_semantics=("parallel", "arbitrary", "arbitrary"),
            vmem_limit_bytes=32 * 1024 * 1024),
    )(boxes_rm, boxes_cm)


# ----------------------------------------------------------------------------
# Kernel 3: greedy NMS + top-k (serial scan over sorted IoU rows inside Pallas;
#   keep mask in VMEM, kept-count in SMEM).
# ----------------------------------------------------------------------------
def _nms_kernel(valid_ref, iou_ref, keep_ref, keep_vec, out_vec, count_ref, *,
                iou_threshold, max_det):
    bi = pl.program_id(0)
    n = iou_ref.shape[1]
    lane = lax.broadcasted_iota(jnp.int32, (1, n), 1)

    keep_vec[...] = jnp.zeros_like(keep_vec)
    out_vec[...] = jnp.zeros_like(out_vec)
    count_ref[0] = 0

    def body(i, carry):
        # boxes are already sorted by descending score; box i is suppressed iff
        # a kept, higher-scored box overlaps with IoU > threshold (torchvision).
        row = iou_ref[0, pl.ds(i, 1), :]                         # (1, N)
        kept = keep_vec[...]                                     # (1, N)
        overlap = jnp.where((row > iou_threshold) & (kept > 0.5) & (lane < i),
                            1.0, 0.0)
        suppressed = jnp.max(overlap, axis=1, keepdims=True)[0, 0] > 0.5
        take = jnp.logical_and(valid_ref[bi, i] > 0.5,
                               jnp.logical_not(suppressed))
        cnt = count_ref[0]
        sel = lane == i
        keep_vec[...] = jnp.where(sel, jnp.where(take, 1.0, 0.0), kept)
        # keep[:max_detections_per_image]: only the first max_det kept boxes
        out_vec[...] = jnp.where(sel & take & (cnt < max_det), 1.0, out_vec[...])
        count_ref[0] = cnt + take.astype(jnp.int32)
        return carry

    lax.fori_loop(0, n, body, 0)
    keep_ref[0] = out_vec[...]


def nms_topk(iou, valid, *, iou_threshold, max_det):
    B, N, _ = iou.shape
    kern = functools.partial(_nms_kernel, iou_threshold=float(iou_threshold),
                             max_det=int(max_det))
    keep = pl.pallas_call(
        kern,
        out_shape=jax.ShapeDtypeStruct((B, 1, N), jnp.float32),
        grid=(B,),
        in_specs=[
            pl.BlockSpec(memory_space=pltpu.MemorySpace.SMEM),   # valid (B, N)
            pl.BlockSpec((1, N, N), lambda bi: (bi, 0, 0)),
        ],
        out_specs=pl.BlockSpec((1, 1, N), lambda bi: (bi, 0, 0)),
        scratch_shapes=[
            pltpu.VMEM((1, N), jnp.float32),   # full NMS keep (for suppression)
            pltpu.VMEM((1, N), jnp.float32),   # keep AND rank <= max_det
            pltpu.SMEM((1,), jnp.int32),       # running count of kept boxes
        ],
        compiler_params=pltpu.CompilerParams(
            dimension_semantics=("parallel",)),
    )(valid, iou)
    return keep[:, 0, :]


# ----------------------------------------------------------------------------
# RegionExtractor wrapper
# ----------------------------------------------------------------------------
class RegionExtractorPallas:
    def __init__(self, score_threshold=0.001, min_size=25, iou_threshold=0.3,
                 max_detections_per_image=100, in_channels=4, anchor_half=6.0,
                 key=None):
        self.score_threshold = score_threshold
        self.min_size = min_size
        self.iou_threshold = iou_threshold
        self.max_detections_per_image = max_detections_per_image
        self.anchor_half = anchor_half
        key = jax.random.PRNGKey(0) if key is None else key
        kw, kb = jax.random.split(key)
        # deterministic synthetic proposal-head parameters (C -> [dx1,dy1,dx2,dy2,score])
        self.w = jax.random.normal(kw, (N_HEAD, in_channels), jnp.float32) * 0.5
        self.b = jax.random.normal(kb, (N_HEAD,), jnp.float32) * 0.1

    @staticmethod
    def _make_anchors(H, W, half):
        ys, xs = jnp.meshgrid(jnp.arange(H, dtype=jnp.float32),
                              jnp.arange(W, dtype=jnp.float32), indexing="ij")
        cx = xs.reshape(-1)
        cy = ys.reshape(-1)
        # coord-major (4, HW) so it lines up with the lane-dense kernel layout
        return jnp.stack([cx - half, cy - half, cx + half, cy + half], axis=0)

    def __call__(self, batch):
        """batch: [B, C, H, W] float32.  Returns (sorted_boxes [B,N,4], keep_mask [B,N])."""
        B, C, H, W = batch.shape
        anchors = self._make_anchors(H, W, self.anchor_half)

        boxes_cm, scores, valid = proposal_head(
            batch, self.w, self.b, anchors,
            min_size=self.min_size, score_threshold=self.score_threshold)

        # per-image sort by descending score (NMS ordering).
        # NOTE: jnp.argsort is stable; torch.sort tie order may differ on equal scores.
        order = jnp.argsort(-scores, axis=1)                                   # (B, N)
        boxes_cm_s = jnp.take_along_axis(boxes_cm, order[:, None, :], axis=2)  # (B, 4, N)
        valid_s = jnp.take_along_axis(valid, order, axis=1)                    # (B, N)
        boxes_rm_s = jnp.transpose(boxes_cm_s, (0, 2, 1))                      # (B, N, 4) tiny

        iou = pairwise_iou(boxes_rm_s, boxes_cm_s)                             # (B, N, N)
        keep = nms_topk(iou, valid_s,
                        iou_threshold=self.iou_threshold,
                        max_det=self.max_detections_per_image)                 # (B, N)
        return boxes_rm_s, keep > 0.5


def assemble_regions(boxes_s, keep):
    """Host-side dynamic-shape glue: mirrors repeat_interleave + torch.cat -> [N, 5]."""
    boxes_np = np.asarray(boxes_s)
    keep_np = np.asarray(keep)
    rows = []
    for b in range(boxes_np.shape[0]):
        kb = boxes_np[b][keep_np[b]]
        idx = np.full((kb.shape[0], 1), float(b), dtype=boxes_np.dtype)
        rows.append(np.concatenate([idx, kb], axis=1))
    if not rows:
        return np.zeros((0, 5), np.float32)
    return np.concatenate(rows, axis=0)


if __name__ == "__main__":
    key = jax.random.PRNGKey(0)
    kx, kparams = jax.random.split(key)

    B, C, H, W = 2, 4, 16, 16
    x = jax.random.normal(kx, (B, C, H, W), jnp.float32)

    # min_size=5 (instead of the default 25) so proposals survive on a 16x16 toy image
    extractor = RegionExtractorPallas(score_threshold=0.001, min_size=5,
                                      iou_threshold=0.3,
                                      max_detections_per_image=100,
                                      in_channels=C, key=kparams)

    boxes_s, keep = extractor(x)
    jax.block_until_ready((boxes_s, keep))

    regions = assemble_regions(boxes_s, keep)       # [N, 5]: (batch_idx, x1, y1, x2, y2)
    assert regions.ndim == 2 and regions.shape[1] == 5
    print("KERNEL_OK")
</pallas_src>

<mosaic_0001>
module attributes {stable_mosaic.version = 11 : i64} {
  func.func @_proposal_kernel(%arg0: i32, %arg1: i32, %arg2: memref<1x4x256xf32, #tpu.memory_space<vmem>>, %arg3: memref<4x256xf32, #tpu.memory_space<vmem>>, %arg4: memref<5x4xf32, #tpu.memory_space<smem>>, %arg5: memref<5xf32, #tpu.memory_space<smem>>, %arg6: memref<1x8x256xf32, #tpu.memory_space<vmem>>) attributes {dimension_semantics = [#tpu.dimension_semantics<parallel>, #tpu.dimension_semantics<parallel>], iteration_bounds = array<i64: 2, 1>, scalar_prefetch = 0 : i64, scratch_operands = 0 : i64, tpu.core_type = #tpu.core_type<tc>, window_params = [{transform_indices = @transform_0, window_bounds = array<i64: 1, 4, 256>}, {transform_indices = @transform_1, window_bounds = array<i64: 4, 256>}, {transform_indices = @transform_2, window_bounds = array<i64: 5, 4>}, {transform_indices = @transform_3, window_bounds = array<i64: 5>}, {transform_indices = @transform_4, window_bounds = array<i64: 1, 8, 256>}]} {
    %c0 = arith.constant 0 : index
    %c0_0 = arith.constant 0 : index
    %c0_1 = arith.constant 0 : index
    %0 = vector.load %arg2[%c0, %c0_0, %c0_1] : memref<1x4x256xf32, #tpu.memory_space<vmem>>, vector<1x4x256xf32>
    %1 = vector.shape_cast %0 : vector<1x4x256xf32> to vector<4x256xf32>
    %2 = vector.extract_strided_slice %1 {offsets = [0, 0], sizes = [1, 256], strides = [1, 1]} : vector<4x256xf32> to vector<1x256xf32>
    %c0_2 = arith.constant 0 : index
    %c0_3 = arith.constant 0 : index
    %3 = memref.load %arg4[%c0_2, %c0_3] : memref<5x4xf32, #tpu.memory_space<smem>>
    %4 = vector.broadcast %3 : f32 to vector<1x256xf32>
    %5 = arith.mulf %2, %4 : vector<1x256xf32>
    %6 = vector.extract_strided_slice %1 {offsets = [1, 0], sizes = [1, 256], strides = [1, 1]} : vector<4x256xf32> to vector<1x256xf32>
    %c0_4 = arith.constant 0 : index
    %c1 = arith.constant 1 : index
    %7 = memref.load %arg4[%c0_4, %c1] : memref<5x4xf32, #tpu.memory_space<smem>>
    %8 = vector.broadcast %7 : f32 to vector<1x256xf32>
    %9 = arith.mulf %6, %8 : vector<1x256xf32>
    %10 = arith.addf %5, %9 : vector<1x256xf32>
    %11 = vector.extract_strided_slice %1 {offsets = [2, 0], sizes = [1, 256], strides = [1, 1]} : vector<4x256xf32> to vector<1x256xf32>
    %c0_5 = arith.constant 0 : index
    %c2 = arith.constant 2 : index
    %12 = memref.load %arg4[%c0_5, %c2] : memref<5x4xf32, #tpu.memory_space<smem>>
    %13 = vector.broadcast %12 : f32 to vector<1x256xf32>
    %14 = arith.mulf %11, %13 : vector<1x256xf32>
    %15 = arith.addf %10, %14 : vector<1x256xf32>
    %16 = vector.extract_strided_slice %1 {offsets = [3, 0], sizes = [1, 256], strides = [1, 1]} : vector<4x256xf32> to vector<1x256xf32>
    %c0_6 = arith.constant 0 : index
    %c3 = arith.constant 3 : index
    %17 = memref.load %arg4[%c0_6, %c3] : memref<5x4xf32, #tpu.memory_space<smem>>
    %18 = vector.broadcast %17 : f32 to vector<1x256xf32>
    %19 = arith.mulf %16, %18 : vector<1x256xf32>
    %20 = arith.addf %15, %19 : vector<1x256xf32>
    %c0_7 = arith.constant 0 : index
    %21 = memref.load %arg5[%c0_7] : memref<5xf32, #tpu.memory_space<smem>>
    %22 = vector.broadcast %21 : f32 to vector<1x256xf32>
    %23 = arith.addf %20, %22 : vector<1x256xf32>
    %24 = vector.extract_strided_slice %1 {offsets = [0, 0], sizes = [1, 256], strides = [1, 1]} : vector<4x256xf32> to vector<1x256xf32>
    %c1_8 = arith.constant 1 : index
    %c0_9 = arith.constant 0 : index
    %25 = memref.load %arg4[%c1_8, %c0_9] : memref<5x4xf32, #tpu.memory_space<smem>>
    %26 = vector.broadcast %25 : f32 to vector<1x256xf32>
    %27 = arith.mulf %24, %26 : vector<1x256xf32>
    %28 = vector.extract_strided_slice %1 {offsets = [1, 0], sizes = [1, 256], strides = [1, 1]} : vector<4x256xf32> to vector<1x256xf32>
    %c1_10 = arith.constant 1 : index
    %c1_11 = arith.constant 1 : index
    %29 = memref.load %arg4[%c1_10, %c1_11] : memref<5x4xf32, #tpu.memory_space<smem>>
    %30 = vector.broadcast %29 : f32 to vector<1x256xf32>
    %31 = arith.mulf %28, %30 : vector<1x256xf32>
    %32 = arith.addf %27, %31 : vector<1x256xf32>
    %33 = vector.extract_strided_slice %1 {offsets = [2, 0], sizes = [1, 256], strides = [1, 1]} : vector<4x256xf32> to vector<1x256xf32>
    %c1_12 = arith.constant 1 : index
    %c2_13 = arith.constant 2 : index
    %34 = memref.load %arg4[%c1_12, %c2_13] : memref<5x4xf32, #tpu.memory_space<smem>>
    %35 = vector.broadcast %34 : f32 to vector<1x256xf32>
    %36 = arith.mulf %33, %35 : vector<1x256xf32>
    %37 = arith.addf %32, %36 : vector<1x256xf32>
    %38 = vector.extract_strided_slice %1 {offsets = [3, 0], sizes = [1, 256], strides = [1, 1]} : vector<4x256xf32> to vector<1x256xf32>
    %c1_14 = arith.constant 1 : index
    %c3_15 = arith.constant 3 : index
    %39 = memref.load %arg4[%c1_14, %c3_15] : memref<5x4xf32, #tpu.memory_space<smem>>
    %40 = vector.broadcast %39 : f32 to vector<1x256xf32>
    %41 = arith.mulf %38, %40 : vector<1x256xf32>
    %42 = arith.addf %37, %41 : vector<1x256xf32>
    %c1_16 = arith.constant 1 : index
    %43 = memref.load %arg5[%c1_16] : memref<5xf32, #tpu.memory_space<smem>>
    %44 = vector.broadcast %43 : f32 to vector<1x256xf32>
    %45 = arith.addf %42, %44 : vector<1x256xf32>
    %46 = vector.extract_strided_slice %1 {offsets = [0, 0], sizes = [1, 256], strides = [1, 1]} : vector<4x256xf32> to vector<1x256xf32>
    %c2_17 = arith.constant 2 : index
    %c0_18 = arith.constant 0 : index
    %47 = memref.load %arg4[%c2_17, %c0_18] : memref<5x4xf32, #tpu.memory_space<smem>>
    %48 = vector.broadcast %47 : f32 to vector<1x256xf32>
    %49 = arith.mulf %46, %48 : vector<1x256xf32>
    %50 = vector.extract_strided_slice %1 {offsets = [1, 0], sizes = [1, 256], strides = [1, 1]} : vector<4x256xf32> to vector<1x256xf32>
    %c2_19 = arith.constant 2 : index
    %c1_20 = arith.constant 1 : index
    %51 = memref.load %arg4[%c2_19, %c1_20] : memref<5x4xf32, #tpu.memory_space<smem>>
    %52 = vector.broadcast %51 : f32 to vector<1x256xf32>
    %53 = arith.mulf %50, %52 : vector<1x256xf32>
    %54 = arith.addf %49, %53 : vector<1x256xf32>
    %55 = vector.extract_strided_slice %1 {offsets = [2, 0], sizes = [1, 256], strides = [1, 1]} : vector<4x256xf32> to vector<1x256xf32>
    %c2_21 = arith.constant 2 : index
    %c2_22 = arith.constant 2 : index
    %56 = memref.load %arg4[%c2_21, %c2_22] : memref<5x4xf32, #tpu.memory_space<smem>>
    %57 = vector.broadcast %56 : f32 to vector<1x256xf32>
    %58 = arith.mulf %55, %57 : vector<1x256xf32>
    %59 = arith.addf %54, %58 : vector<1x256xf32>
    %60 = vector.extract_strided_slice %1 {offsets = [3, 0], sizes = [1, 256], strides = [1, 1]} : vector<4x256xf32> to vector<1x256xf32>
    %c2_23 = arith.constant 2 : index
    %c3_24 = arith.constant 3 : index
    %61 = memref.load %arg4[%c2_23, %c3_24] : memref<5x4xf32, #tpu.memory_space<smem>>
    %62 = vector.broadcast %61 : f32 to vector<1x256xf32>
    %63 = arith.mulf %60, %62 : vector<1x256xf32>
    %64 = arith.addf %59, %63 : vector<1x256xf32>
    %c2_25 = arith.constant 2 : index
    %65 = memref.load %arg5[%c2_25] : memref<5xf32, #tpu.memory_space<smem>>
    %66 = vector.broadcast %65 : f32 to vector<1x256xf32>
    %67 = arith.addf %64, %66 : vector<1x256xf32>
    %68 = vector.extract_strided_slice %1 {offsets = [0, 0], sizes = [1, 256], strides = [1, 1]} : vector<4x256xf32> to vector<1x256xf32>
    %c3_26 = arith.constant 3 : index
    %c0_27 = arith.constant 0 : index
    %69 = memref.load %arg4[%c3_26, %c0_27] : memref<5x4xf32, #tpu.memory_space<smem>>
    %70 = vector.broadcast %69 : f32 to vector<1x256xf32>
    %71 = arith.mulf %68, %70 : vector<1x256xf32>
    %72 = vector.extract_strided_slice %1 {offsets = [1, 0], sizes = [1, 256], strides = [1, 1]} : vector<4x256xf32> to vector<1x256xf32>
    %c3_28 = arith.constant 3 : index
    %c1_29 = arith.constant 1 : index
    %73 = memref.load %arg4[%c3_28, %c1_29] : memref<5x4xf32, #tpu.memory_space<smem>>
    %74 = vector.broadcast %73 : f32 to vector<1x256xf32>
    %75 = arith.mulf %72, %74 : vector<1x256xf32>
    %76 = arith.addf %71, %75 : vector<1x256xf32>
    %77 = vector.extract_strided_slice %1 {offsets = [2, 0], sizes = [1, 256], strides = [1, 1]} : vector<4x256xf32> to vector<1x256xf32>
    %c3_30 = arith.constant 3 : index
    %c2_31 = arith.constant 2 : index
    %78 = memref.load %arg4[%c3_30, %c2_31] : memref<5x4xf32, #tpu.memory_space<smem>>
    %79 = vector.broadcast %78 : f32 to vector<1x256xf32>
    %80 = arith.mulf %77, %79 : vector<1x256xf32>
    %81 = arith.addf %76, %80 : vector<1x256xf32>
    %82 = vector.extract_strided_slice %1 {offsets = [3, 0], sizes = [1, 256], strides = [1, 1]} : vector<4x256xf32> to vector<1x256xf32>
    %c3_32 = arith.constant 3 : index
    %c3_33 = arith.constant 3 : index
    %83 = memref.load %arg4[%c3_32, %c3_33] : memref<5x4xf32, #tpu.memory_space<smem>>
    %84 = vector.broadcast %83 : f32 to vector<1x256xf32>
    %85 = arith.mulf %82, %84 : vector<1x256xf32>
    %86 = arith.addf %81, %85 : vector<1x256xf32>
    %c3_34 = arith.constant 3 : index
    %87 = memref.load %arg5[%c3_34] : memref<5xf32, #tpu.memory_space<smem>>
    %88 = vector.broadcast %87 : f32 to vector<1x256xf32>
    %89 = arith.addf %86, %88 : vector<1x256xf32>
    %90 = vector.extract_strided_slice %1 {offsets = [0, 0], sizes = [1, 256], strides = [1, 1]} : vector<4x256xf32> to vector<1x256xf32>
    %c4 = arith.constant 4 : index
    %c0_35 = arith.constant 0 : index
    %91 = memref.load %arg4[%c4, %c0_35] : memref<5x4xf32, #tpu.memory_space<smem>>
    %92 = vector.broadcast %91 : f32 to vector<1x256xf32>
    %93 = arith.mulf %90, %92 : vector<1x256xf32>
    %94 = vector.extract_strided_slice %1 {offsets = [1, 0], sizes = [1, 256], strides = [1, 1]} : vector<4x256xf32> to vector<1x256xf32>
    %c4_36 = arith.constant 4 : index
    %c1_37 = arith.constant 1 : index
    %95 = memref.load %arg4[%c4_36, %c1_37] : memref<5x4xf32, #tpu.memory_space<smem>>
    %96 = vector.broadcast %95 : f32 to vector<1x256xf32>
    %97 = arith.mulf %94, %96 : vector<1x256xf32>
    %98 = arith.addf %93, %97 : vector<1x256xf32>
    %99 = vector.extract_strided_slice %1 {offsets = [2, 0], sizes = [1, 256], strides = [1, 1]} : vector<4x256xf32> to vector<1x256xf32>
    %c4_38 = arith.constant 4 : index
    %c2_39 = arith.constant 2 : index
    %100 = memref.load %arg4[%c4_38, %c2_39] : memref<5x4xf32, #tpu.memory_space<smem>>
    %101 = vector.broadcast %100 : f32 to vector<1x256xf32>
    %102 = arith.mulf %99, %101 : vector<1x256xf32>
    %103 = arith.addf %98, %102 : vector<1x256xf32>
    %104 = vector.extract_strided_slice %1 {offsets = [3, 0], sizes = [1, 256], strides = [1, 1]} : vector<4x256xf32> to vector<1x256xf32>
    %c4_40 = arith.constant 4 : index
    %c3_41 = arith.constant 3 : index
    %105 = memref.load %arg4[%c4_40, %c3_41] : memref<5x4xf32, #tpu.memory_space<smem>>
    %106 = vector.broadcast %105 : f32 to vector<1x256xf32>
    %107 = arith.mulf %104, %106 : vector<1x256xf32>
    %108 = arith.addf %103, %107 : vector<1x256xf32>
    %c4_42 = arith.constant 4 : index
    %109 = memref.load %arg5[%c4_42] : memref<5xf32, #tpu.memory_space<smem>>
    %110 = vector.broadcast %109 : f32 to vector<1x256xf32>
    %111 = arith.addf %108, %110 : vector<1x256xf32>
    %112 = math.tanh %23 : vector<1x256xf32>
    %cst = arith.constant 3.000000e+00 : f32
    %113 = vector.broadcast %cst : f32 to vector<1x256xf32>
    %114 = arith.mulf %112, %113 : vector<1x256xf32>
    %115 = math.tanh %45 : vector<1x256xf32>
    %cst_43 = arith.constant 3.000000e+00 : f32
    %116 = vector.broadcast %cst_43 : f32 to vector<1x256xf32>
    %117 = arith.mulf %115, %116 : vector<1x256xf32>
    %118 = math.tanh %67 : vector<1x256xf32>
    %cst_44 = arith.constant 3.000000e+00 : f32
    %119 = vector.broadcast %cst_44 : f32 to vector<1x256xf32>
    %120 = arith.mulf %118, %119 : vector<1x256xf32>
    %121 = math.tanh %89 : vector<1x256xf32>
    %cst_45 = arith.constant 3.000000e+00 : f32
    %122 = vector.broadcast %cst_45 : f32 to vector<1x256xf32>
    %123 = arith.mulf %121, %122 : vector<1x256xf32>
    %c0_46 = arith.constant 0 : index
    %c0_47 = arith.constant 0 : index
    %124 = vector.load %arg3[%c0_46, %c0_47] : memref<4x256xf32, #tpu.memory_space<vmem>>, vector<1x256xf32>
    %c1_48 = arith.constant 1 : index
    %c0_49 = arith.constant 0 : index
    %125 = vector.load %arg3[%c1_48, %c0_49] : memref<4x256xf32, #tpu.memory_space<vmem>>, vector<1x256xf32>
    %c2_50 = arith.constant 2 : index
    %c0_51 = arith.constant 0 : index
    %126 = vector.load %arg3[%c2_50, %c0_51] : memref<4x256xf32, #tpu.memory_space<vmem>>, vector<1x256xf32>
    %c3_52 = arith.constant 3 : index
    %c0_53 = arith.constant 0 : index
    %127 = vector.load %arg3[%c3_52, %c0_53] : memref<4x256xf32, #tpu.memory_space<vmem>>, vector<1x256xf32>
    %128 = arith.addf %124, %114 : vector<1x256xf32>
    %cst_54 = arith.constant 0.000000e+00 : f32
    %cst_55 = arith.constant 1.600000e+01 : f32
    %129 = vector.broadcast %cst_54 : f32 to vector<1x256xf32>
    %130 = arith.maximumf %129, %128 : vector<1x256xf32>
    %131 = vector.broadcast %cst_55 : f32 to vector<1x256xf32>
    %132 = arith.minimumf %131, %130 : vector<1x256xf32>
    %133 = arith.addf %125, %117 : vector<1x256xf32>
    %cst_56 = arith.constant 0.000000e+00 : f32
    %cst_57 = arith.constant 1.600000e+01 : f32
    %134 = vector.broadcast %cst_56 : f32 to vector<1x256xf32>
    %135 = arith.maximumf %134, %133 : vector<1x256xf32>
    %136 = vector.broadcast %cst_57 : f32 to vector<1x256xf32>
    %137 = arith.minimumf %136, %135 : vector<1x256xf32>
    %138 = arith.addf %126, %120 : vector<1x256xf32>
    %cst_58 = arith.constant 0.000000e+00 : f32
    %cst_59 = arith.constant 1.600000e+01 : f32
    %139 = vector.broadcast %cst_58 : f32 to vector<1x256xf32>
    %140 = arith.maximumf %139, %138 : vector<1x256xf32>
    %141 = vector.broadcast %cst_59 : f32 to vector<1x256xf32>
    %142 = arith.minimumf %141, %140 : vector<1x256xf32>
    %143 = arith.addf %127, %123 : vector<1x256xf32>
    %cst_60 = arith.constant 0.000000e+00 : f32
    %cst_61 = arith.constant 1.600000e+01 : f32
    %144 = vector.broadcast %cst_60 : f32 to vector<1x256xf32>
    %145 = arith.maximumf %144, %143 : vector<1x256xf32>
    %146 = vector.broadcast %cst_61 : f32 to vector<1x256xf32>
    %147 = arith.minimumf %146, %145 : vector<1x256xf32>
    %148 = arith.minimumf %132, %142 : vector<1x256xf32>
    %149 = arith.maximumf %132, %142 : vector<1x256xf32>
    %150 = arith.minimumf %137, %147 : vector<1x256xf32>
    %151 = arith.maximumf %137, %147 : vector<1x256xf32>
    %cst_62 = arith.constant 0.000000e+00 : f32
    %152 = vector.broadcast %cst_62 : f32 to vector<1x256xf32>
    %153 = arith.subf %152, %111 : vector<1x256xf32>
    %154 = math.exp %153 : vector<1x256xf32>
    %cst_63 = arith.constant 1.000000e+00 : f32
    %155 = vector.broadcast %cst_63 : f32 to vector<1x256xf32>
    %156 = arith.addf %155, %154 : vector<1x256xf32>
    %cst_64 = arith.constant 1.000000e+00 : f32
    %157 = vector.broadcast %cst_64 : f32 to vector<1x256xf32>
    %158 = arith.divf %157, %156 : vector<1x256xf32>
    %159 = arith.subf %149, %148 : vector<1x256xf32>
    %160 = arith.subf %151, %150 : vector<1x256xf32>
    %cst_65 = arith.constant 5.000000e+00 : f32
    %161 = vector.broadcast %cst_65 : f32 to vector<1x256xf32>
    %162 = arith.cmpf oge, %159, %161 : vector<1x256xf32>
    %cst_66 = arith.constant 5.000000e+00 : f32
    %163 = vector.broadcast %cst_66 : f32 to vector<1x256xf32>
    %164 = arith.cmpf oge, %160, %163 : vector<1x256xf32>
    %165 = arith.andi %162, %164 : vector<1x256xi1>
    %cst_67 = arith.constant 1.000000e-03 : f32
    %166 = vector.broadcast %cst_67 : f32 to vector<1x256xf32>
    %167 = arith.cmpf oge, %158, %166 : vector<1x256xf32>
    %168 = arith.andi %165, %167 : vector<1x256xi1>
    %cst_68 = arith.constant 1.000000e+00 : f32
    %cst_69 = arith.constant 0.000000e+00 : f32
    %169 = vector.broadcast %cst_68 : f32 to vector<1x256xf32>
    %170 = vector.broadcast %cst_69 : f32 to vector<1x256xf32>
    %171 = arith.select %168, %169, %170 : vector<1x256xi1>, vector<1x256xf32>
    %c0_70 = arith.constant 0 : index
    %c0_71 = arith.constant 0 : index
    %c0_72 = arith.constant 0 : index
    %172 = vector.load %arg6[%c0_70, %c0_71, %c0_72] : memref<1x8x256xf32, #tpu.memory_space<vmem>>, vector<1x1x256xf32>
    %173 = vector.shape_cast %172 : vector<1x1x256xf32> to vector<1x256xf32>
    %174 = vector.shape_cast %148 : vector<1x256xf32> to vector<1x1x256xf32>
    tpu.vector_store %arg6[%c0_70, %c0_71, %c0_72], %174 {strides = array<i32>} : memref<1x8x256xf32, #tpu.memory_space<vmem>>, vector<1x1x256xf32>,
    %c0_73 = arith.constant 0 : index
    %c1_74 = arith.constant 1 : index
    %c0_75 = arith.constant 0 : index
    %175 = vector.load %arg6[%c0_73, %c1_74, %c0_75] : memref<1x8x256xf32, #tpu.memory_space<vmem>>, vector<1x1x256xf32>
    %176 = vector.shape_cast %175 : vector<1x1x256xf32> to vector<1x256xf32>
    %177 = vector.shape_cast %150 : vector<1x256xf32> to vector<1x1x256xf32>
    tpu.vector_store %arg6[%c0_73, %c1_74, %c0_75], %177 {strides = array<i32>} : memref<1x8x256xf32, #tpu.memory_space<vmem>>, vector<1x1x256xf32>,
    %c0_76 = arith.constant 0 : index
    %c2_77 = arith.constant 2 : index
    %c0_78 = arith.constant 0 : index
    %178 = vector.load %arg6[%c0_76, %c2_77, %c0_78] : memref<1x8x256xf32, #tpu.memory_space<vmem>>, vector<1x1x256xf32>
    %179 = vector.shape_cast %178 : vector<1x1x256xf32> to vector<1x256xf32>
    %180 = vector.shape_cast %149 : vector<1x256xf32> to vector<1x1x256xf32>
    tpu.vector_store %arg6[%c0_76, %c2_77, %c0_78], %180 {strides = array<i32>} : memref<1x8x256xf32, #tpu.memory_space<vmem>>, vector<1x1x256xf32>,
    %c0_79 = arith.constant 0 : index
    %c3_80 = arith.constant 3 : index
    %c0_81 = arith.constant 0 : index
    %181 = vector.load %arg6[%c0_79, %c3_80, %c0_81] : memref<1x8x256xf32, #tpu.memory_space<vmem>>, vector<1x1x256xf32>
    %182 = vector.shape_cast %181 : vector<1x1x256xf32> to vector<1x256xf32>
    %183 = vector.shape_cast %151 : vector<1x256xf32> to vector<1x1x256xf32>
    tpu.vector_store %arg6[%c0_79, %c3_80, %c0_81], %183 {strides = array<i32>} : memref<1x8x256xf32, #tpu.memory_space<vmem>>, vector<1x1x256xf32>,
    %c0_82 = arith.constant 0 : index
    %c4_83 = arith.constant 4 : index
    %c0_84 = arith.constant 0 : index
    %184 = vector.load %arg6[%c0_82, %c4_83, %c0_84] : memref<1x8x256xf32, #tpu.memory_space<vmem>>, vector<1x1x256xf32>
    %185 = vector.shape_cast %184 : vector<1x1x256xf32> to vector<1x256xf32>
    %186 = vector.shape_cast %158 : vector<1x256xf32> to vector<1x1x256xf32>
    tpu.vector_store %arg6[%c0_82, %c4_83, %c0_84], %186 {strides = array<i32>} : memref<1x8x256xf32, #tpu.memory_space<vmem>>, vector<1x1x256xf32>,
    %c0_85 = arith.constant 0 : index
    %c5 = arith.constant 5 : index
    %c0_86 = arith.constant 0 : index
    %187 = vector.load %arg6[%c0_85, %c5, %c0_86] : memref<1x8x256xf32, #tpu.memory_space<vmem>>, vector<1x1x256xf32>
    %188 = vector.shape_cast %187 : vector<1x1x256xf32> to vector<1x256xf32>
    %189 = vector.shape_cast %171 : vector<1x256xf32> to vector<1x1x256xf32>
    tpu.vector_store %arg6[%c0_85, %c5, %c0_86], %189 {strides = array<i32>} : memref<1x8x256xf32, #tpu.memory_space<vmem>>, vector<1x1x256xf32>,
    %cst_87 = arith.constant 0.000000e+00 : f32
    %190 = vector.broadcast %cst_87 : f32 to vector<2x256xf32>
    %c0_88 = arith.constant 0 : index
    %c6 = arith.constant 6 : index
    %c0_89 = arith.constant 0 : index
    %191 = vector.load %arg6[%c0_88, %c6, %c0_89] : memref<1x8x256xf32, #tpu.memory_space<vmem>>, vector<1x2x256xf32>
    %192 = vector.shape_cast %191 : vector<1x2x256xf32> to vector<2x256xf32>
    %193 = vector.shape_cast %190 : vector<2x256xf32> to vector<1x2x256xf32>
    tpu.vector_store %arg6[%c0_88, %c6, %c0_89], %193 {strides = array<i32>} : memref<1x8x256xf32, #tpu.memory_space<vmem>>, vector<1x2x256xf32>,
    return
  }
  func.func @transform_0(%arg0: i32, %arg1: i32) -> (i32, i32, i32) {
    %c0_i32 = arith.constant 0 : i32
    %c0_i32_0 = arith.constant 0 : i32
    return %arg0, %c0_i32, %arg1 : i32, i32, i32
  }
  func.func @transform_1(%arg0: i32, %arg1: i32) -> (i32, i32) {
    %c0_i32 = arith.constant 0 : i32
    %c0_i32_0 = arith.constant 0 : i32
    return %c0_i32, %arg1 : i32, i32
  }
  func.func @transform_2(%arg0: i32, %arg1: i32) -> (i32, i32) {
    %c0_i32 = arith.constant 0 : i32
    %c0_i32_0 = arith.constant 0 : i32
    %c0_i32_1 = arith.constant 0 : i32
    return %c0_i32, %c0_i32_0 : i32, i32
  }
  func.func @transform_3(%arg0: i32, %arg1: i32) -> i32 {
    %c0_i32 = arith.constant 0 : i32
    %c0_i32_0 = arith.constant 0 : i32
    return %c0_i32 : i32
  }
  func.func @transform_4(%arg0: i32, %arg1: i32) -> (i32, i32, i32) {
    %c0_i32 = arith.constant 0 : i32
    %c0_i32_0 = arith.constant 0 : i32
    return %arg0, %c0_i32, %arg1 : i32, i32, i32
  }
}

</mosaic_0001>

<llo_original>
// kernel: tpu_custom_call.1
$region0: #{tpu_custom_call.1}
  #allocation0 [shape = 'u32[]', space=smem, size = 0x4, offset = 0x4, fixed_abs, tag = 'smem constant byte address 0x4 - core index']
  #allocation1 [shape = 'u32[72,128]{1,0:T(1,128)}', space=vmem, size = 0x9000, scoped, tag = 'internal scratch']
  %s0 = inlined_call_operand.hbm [shape: f32[2,4,256], index: 0, kind: input, shape index: {}]
  %s1 = inlined_call_operand.vmem [shape: f32[4,256], index: 1, kind: input, shape index: {}]
  %s2 = inlined_call_operand.vmem [shape: f32[5,4], index: 2, kind: input, shape index: {}]
  %s3 = inlined_call_operand.vmem [shape: f32[5], index: 3, kind: input, shape index: {}]
  %s4 = inlined_call_operand.hbm [shape: f32[2,8,256], index: 4, kind: output, shape index: {}]
  %s5 = sld [smem:[#allocation0]]
  $region61: #{tpu_custom_call.1} parent=0
    _
  %s7 = ssub.s32 1, %s5
  %s8 = scalar_select 0, %s7, %s5
  $region1: #{tpu_custom_call.1} parent=0
    #allocation2 [shape = 'u8[8192]{0}', space=vmem, size = 0x2000, scoped, tag = 'input window, operand 0']
    #allocation3 [shape = 's32[2]{0}', space=sflag, size = 0x8, scoped, tag = 'scoped memory for tpu_custom_call.1']
    #allocation4 [shape = 's32[2]{0}', space=sflag, size = 0x8, scoped, tag = 'scoped memory for tpu_custom_call.1']
    #allocation5 [shape = 's32[2]{0}', space=sflag, size = 0x8, scoped, tag = 'scoped memory for tpu_custom_call.1']
    #allocation6 [shape = 'u8[4096]{0}', space=smem, size = 0x1000, scoped, tag = 'input window, operand 2, single buffered']
    #allocation7 [shape = 'u8[512]{0}', space=smem, size = 0x200, scoped, tag = 'input window, operand 3, single buffered']
    #allocation8 [shape = 's32[1]{0}', space=sflag, size = 0x4, scoped, tag = 'scoped memory for tpu_custom_call.1']
    #allocation9 [shape = 'u8[16384]{0}', space=vmem, size = 0x4000, scoped, tag = 'output window, operand 0']
    %9 = vsyncpa [#allocation3], 0
    %s10 = scalar_lea.sflag [#allocation3], 1
    %11 = vsyncpa %s10, 0
    %12 = vsyncpa [#allocation5], 0
    %13 = vsyncpa [#allocation8], 0
    %14 = vsyncpa [#allocation4], 0
    %s15 = scalar_lea.sflag [#allocation4], 1
    %16 = vsyncpa %s15, 0
    loop: start=0, step=1, limit=4
    $region2: #{tpu_custom_call.1} parent=1 // loop_pre_header
      _
    $region3: #{tpu_custom_call.1} parent=1 // loop_header
      %s18 = sphi 0, %s22
      %p19 = scmp.ge.s32.totalorder %s18, 4
      %s25 = sphi 0, %s37
      %s26 = sphi 0, %s33
      %s27 = sphi 0, %s25
      %s28 = sphi 0, %s26
      %s29 = sphi 0, %s27
      %s30 = sphi 0, %s28
      %s42 = sphi 0, %s44
      %s45 = sphi 0, %s42
      %s46 = sphi 0, %s45
      %s62 = sphi 0, %s46
      %s68 = sphi 0, %s70
      %s71 = sphi 0, %s68
      %s72 = sphi 0, %s71
      %s88 = sphi 0, %s72
      %s92 = sphi 0, %s92
      %s94 = sphi 0, %s92
      %s95 = sphi 0, %s94
      %s109 = sphi 0, %s95
      %s113 = sphi 0, %s113
      %s115 = sphi 0, %s113
      %s116 = sphi 0, %s115
      %s130 = sphi 0, %s116
      %s138 = sphi 0, %s140
      %s141 = sphi 0, %s138
      %s142 = sphi 0, %s141
      %s158 = sphi 0, %s142
    $region4: #{tpu_custom_call.1} parent=1 // loop_header_branch
      %21 = sbr.rel (%p19) target = $region8
    $region5: #{tpu_custom_call.1} parent=1 // loop_body
      %s23 = ssub.s32 %s18, 1
      %s24 = ssub.s32 %s18, 2
      %s31 = sadd.s32 1, %s26
      %p32 = scmp.ge.s32.totalorder %s31, 1
      %s33 = scalar_select %p32, 0, %s31
      %s34 = sadd.s32 1, %s25
      %s35 = scalar_select %p32, %s34, %s25
      %p36 = scmp.ge.s32.totalorder %s35, 2
      %s37 = scalar_select %p36, 0, %s35
      %s38 = ssub.s32 %s25, %s37
      %s39 = ssub.s32 %s26, %s33
      %s40 = sor.u32 %s38, %s39
      %p41 = scmp.eq.s32.totalorder %s40, 0
      %s43 = sadd.s32 %s42, 1
      %s44 = scalar_select %p41, %s42, %s43
      %p47 = pneg %p41
      %p48 = scmp.eq.s32.totalorder %s18, 1
      %p49 = por %p47, %p48
      %p50 = scmp.ne.s32.totalorder %s42, %s45
      %p51 = scmp.eq.s32.totalorder %s18, 0
      %p52 = por %p50, %p51
      %p53 = scmp.ne.s32.totalorder %s42, %s45
      %p54 = scmp.eq.s32.totalorder %s23, 1
      %p55 = por %p53, %p54
      %p56 = scmp.ne.s32.totalorder %s45, %s46
      %p57 = scmp.eq.s32.totalorder %s23, 0
      %p58 = por %p56, %p57
      %p59 = scmp.ne.s32.totalorder %s45, %s46
      %p60 = scmp.eq.s32.totalorder %s24, 1
      %p61 = por %p59, %p60
      %p63 = scmp.ne.s32.totalorder %s46, %s62
      %p64 = scmp.eq.s32.totalorder %s24, 0
      %p65 = por %p63, %p64
      %s66 = ssub.s32 %s26, %s33
      %p67 = scmp.eq.s32.totalorder %s66, 0
      %s69 = sadd.s32 %s68, 1
      %s70 = scalar_select %p67, %s68, %s69
      %p73 = pneg %p67
      %p74 = scmp.eq.s32.totalorder %s18, 1
      %p75 = por %p73, %p74
      %p76 = scmp.ne.s32.totalorder %s68, %s71
      %p77 = scmp.eq.s32.totalorder %s18, 0
      %p78 = por %p76, %p77
      %p79 = scmp.ne.s32.totalorder %s68, %s71
      %p80 = scmp.eq.s32.totalorder %s23, 1
      %p81 = por %p79, %p80
      %p82 = scmp.ne.s32.totalorder %s71, %s72
      %p83 = scmp.eq.s32.totalorder %s23, 0
      %p84 = por %p82, %p83
      %p85 = scmp.ne.s32.totalorder %s71, %s72
      %p86 = scmp.eq.s32.totalorder %s24, 1
      %p87 = por %p85, %p86
      %p89 = scmp.ne.s32.totalorder %s72, %s88
      %p90 = scmp.eq.s32.totalorder %s24, 0
      %p91 = por %p89, %p90
      %s93 = sadd.s32 %s92, 1
      %p96 = scmp.eq.s32.totalorder %s18, 1
      %p97 = scmp.ne.s32.totalorder %s92, %s94
      %p98 = scmp.eq.s32.totalorder %s18, 0
      %p99 = por %p97, %p98
      %p100 = scmp.ne.s32.totalorder %s92, %s94
      %p101 = scmp.eq.s32.totalorder %s23, 1
      %p102 = por %p100, %p101
      %p103 = scmp.ne.s32.totalorder %s94, %s95
      %p104 = scmp.eq.s32.totalorder %s23, 0
      %p105 = por %p103, %p104
      %p106 = scmp.ne.s32.totalorder %s94, %s95
      %p107 = scmp.eq.s32.totalorder %s24, 1
      %p108 = por %p106, %p107
      %p110 = scmp.ne.s32.totalorder %s95, %s109
      %p111 = scmp.eq.s32.totalorder %s24, 0
      %p112 = por %p110, %p111
      %s114 = sadd.s32 %s113, 1
      %p117 = scmp.eq.s32.totalorder %s18, 1
      %p118 = scmp.ne.s32.totalorder %s113, %s115
      %p119 = scmp.eq.s32.totalorder %s18, 0
      %p120 = por %p118, %p119
      %p121 = scmp.ne.s32.totalorder %s113, %s115
      %p122 = scmp.eq.s32.totalorder %s23, 1
      %p123 = por %p121, %p122
      %p124 = scmp.ne.s32.totalorder %s115, %s116
      %p125 = scmp.eq.s32.totalorder %s23, 0
      %p126 = por %p124, %p125
      %p127 = scmp.ne.s32.totalorder %s115, %s116
      %p128 = scmp.eq.s32.totalorder %s24, 1
      %p129 = por %p127, %p128
      %p131 = scmp.ne.s32.totalorder %s116, %s130
      %p132 = scmp.eq.s32.totalorder %s24, 0
      %p133 = por %p131, %p132
      %s134 = ssub.s32 %s25, %s37
      %s135 = ssub.s32 %s26, %s33
      %s136 = sor.u32 %s134, %s135
      %p137 = scmp.eq.s32.totalorder %s136, 0
      %s139 = sadd.s32 %s138, 1
      %s140 = scalar_select %p137, %s138, %s139
      %p143 = pneg %p137
      %p144 = scmp.eq.s32.totalorder %s18, 1
      %p145 = por %p143, %p144
      %p146 = scmp.ne.s32.totalorder %s138, %s141
      %p147 = scmp.eq.s32.totalorder %s18, 0
      %p148 = por %p146, %p147
      %p149 = scmp.ne.s32.totalorder %s138, %s141
      %p150 = scmp.eq.s32.totalorder %s23, 1
      %p151 = por %p149, %p150
      %p152 = scmp.ne.s32.totalorder %s141, %s142
      %p153 = scmp.eq.s32.totalorder %s23, 0
      %p154 = por %p152, %p153
      %p155 = scmp.ne.s32.totalorder %s141, %s142
      %p156 = scmp.eq.s32.totalorder %s24, 1
      %p157 = por %p155, %p156
      %p159 = scmp.ne.s32.totalorder %s142, %s158
      %p160 = scmp.eq.s32.totalorder %s24, 0
      %p161 = por %p159, %p160
      %p162 = scmp.le.s32.totalorder 1, %s18
      %p163 = scmp.lt.s32.totalorder %s18, 3
      %p164 = pnand %p162, %p163
      %p165 = pneg %p164
      // Predicated region
      $region9: #{tpu_custom_call.1} parent=5 // pred_check
        _
      $region10: #{tpu_custom_call.1} parent=5 // pred_check_branch
        %167 = sbr.rel (%p164) target = $region12
      $region11: #{tpu_custom_call.1} parent=5 // pred_region
        %s168 = ssub.s32 %s18, 1
        // Predicated region
        $region13: #{tpu_custom_call.1} parent=11 // pred_check
          %p169 = pneg %p84
        $region14: #{tpu_custom_call.1} parent=11 // pred_check_branch
          %171 = sbr.rel (%p169) target = $region16
        $region15: #{tpu_custom_call.1} parent=11 // pred_region
          %s172 = smul.u32 2, %s28
          %p173 = scmp.lt.s32.totalorder %s172, 1
          %s174 = scalar_select %p173, %s172, 1
          %s175 = smul.addr %s174, 4
          %s176 = scalar_lea.vmem %s1, %s175
          %s177 = smul.u32 2, %s28
        $region16: #{tpu_custom_call.1} parent=11 // pred_fallthru
          _
        // Predicated region
        $region17: #{tpu_custom_call.1} parent=11 // pred_check
          %p178 = pneg %p105
        $region18: #{tpu_custom_call.1} parent=11 // pred_check_branch
          %180 = sbr.rel (%p178) target = $region20
        $region19: #{tpu_custom_call.1} parent=11 // pred_region
          %182 = vsyncadd [#allocation5], 0
          %s184 = sshll.u32 %s2, 4
          %s185 = int_to_ptr.vmem [resolvable:$true] %s184
          %187 = dma.vmem_to_smem %s185, 128, [#allocation6], [#allocation5]
        $region20: #{tpu_custom_call.1} parent=11 // pred_fallthru
          _
        // Predicated region
        $region21: #{tpu_custom_call.1} parent=11 // pred_check
          %p188 = pneg %p126
        $region22: #{tpu_custom_call.1} parent=11 // pred_check_branch
          %190 = sbr.rel (%p188) target = $region24
        $region23: #{tpu_custom_call.1} parent=11 // pred_region
          %192 = vsyncadd [#allocation8], 0
          %s194 = sshll.u32 %s3, 4
          %s195 = int_to_ptr.vmem [resolvable:$true] %s194
          %197 = dma.vmem_to_smem %s195, 16, [#allocation7], [#allocation8]
        $region24: #{tpu_custom_call.1} parent=11 // pred_fallthru
          _
      $region12: #{tpu_custom_call.1} parent=5 // pred_fallthru
        _
      %p198 = scmp.lt.s32.totalorder %s18, 2
      // Predicated region
      $region25: #{tpu_custom_call.1} parent=5 // pred_check
        %p199 = pneg %p198
      $region26: #{tpu_custom_call.1} parent=5 // pred_check_branch
        %201 = sbr.rel (%p199) target = $region28
      $region27: #{tpu_custom_call.1} parent=5 // pred_region
        // Predicated region
        $region29: #{tpu_custom_call.1} parent=27 // pred_check
          %p202 = pneg %p52
        $region30: #{tpu_custom_call.1} parent=27 // pred_check_branch
          %204 = sbr.rel (%p202) target = $region32
        $region31: #{tpu_custom_call.1} parent=27 // pred_region
          %s205 = sand.u32 %s42, 1
          %s206 = scalar_lea.sflag [#allocation3], %s205
          %s207 = sand.u32 %s42, 1
          %s208 = smul.addr %s207, 8
          %s209 = scalar_lea.vmem [#allocation2], %s208
          %s210 = smul.u32 2, %s26
          %212 = vsyncadd %s206, 0
          %s213 = smul.addr %s25, 2
          %s214 = sadd.s32 %s210, %s213
          %s215 = smul.addr %s214, 4
          %s216 = scalar_lea.hbm %s0, %s215
          %s218 = sshll.u32 %s216, 4
          %s219 = int_to_ptr.hbm [resolvable:$true] %s218
          %s220 = sshll.u32 %s209, 4
          %s221 = int_to_ptr.vmem [resolvable:$true] %s220
          %223 = dma.hbm_to_vmem [thread:$0]  %s219, 128, %s221, %s206
        $region32: #{tpu_custom_call.1} parent=27 // pred_fallthru
          _
      $region28: #{tpu_custom_call.1} parent=5 // pred_fallthru
        _
      %p224 = scmp.le.s32.totalorder 1, %s18
      %p225 = scmp.lt.s32.totalorder %s18, 3
      %p226 = pnand %p224, %p225
      %p227 = pneg %p226
      // Predicated region
      $region33: #{tpu_custom_call.1} parent=5 // pred_check
        _
      $region34: #{tpu_custom_call.1} parent=5 // pred_check_branch
        %229 = sbr.rel (%p226) target = $region36
      $region35: #{tpu_custom_call.1} parent=5 // pred_region
        %s230 = ssub.s32 %s18, 1
        %s231 = sand.u32 %s45, 1
        %s232 = scalar_lea.sflag [#allocation3], %s231
        %s233 = sand.u32 %s45, 1
        %s234 = smul.addr %s233, 8
        %s235 = scalar_lea.vmem [#allocation2], %s234
        // Predicated region
        $region37: #{tpu_custom_call.1} parent=35 // pred_check
          %p236 = pneg %p58
        $region38: #{tpu_custom_call.1} parent=35 // pred_check_branch
          %238 = sbr.rel (%p236) target = $region40
        $region39: #{tpu_custom_call.1} parent=35 // pred_region
          %240 = dma.done %s232, 128
        $region40: #{tpu_custom_call.1} parent=35 // pred_fallthru
          _
        // Predicated region
        $region41: #{tpu_custom_call.1} parent=35 // pred_check
          %p241 = pneg %p105
        $region42: #{tpu_custom_call.1} parent=35 // pred_check_branch
          %243 = sbr.rel (%p241) target = $region44
        $region43: #{tpu_custom_call.1} parent=35 // pred_region
          %245 = dma.done [#allocation5], 128
        $region44: #{tpu_custom_call.1} parent=35 // pred_fallthru
          _
        // Predicated region
        $region45: #{tpu_custom_call.1} parent=35 // pred_check
          %p246 = pneg %p126
        $region46: #{tpu_custom_call.1} parent=35 // pred_check_branch
          %248 = sbr.rel (%p246) target = $region48
        $region47: #{tpu_custom_call.1} parent=35 // pred_region
          %250 = dma.done [#allocation8], 16
        $region48: #{tpu_custom_call.1} parent=35 // pred_fallthru
          _
        %251 = sfence
        %s252 = sand.u32 %s45, 1
        %s253 = scalar_lea.sflag [#allocation3], %s252
        %s254 = sand.u32 %s45, 1
        %s255 = smul.addr %s254, 8
        %s256 = scalar_lea.vmem [#allocation2], %s255
        %p257 = pneg %p58
        %p258 = pneg %p55
        %s259 = smul.u32 2, %s28
        %p260 = scmp.lt.s32.totalorder %s259, 1
        %s261 = scalar_select %p260, %s259, 1
        %s262 = smul.addr %s261, 4
        %s263 = scalar_lea.vmem %s1, %s262
        %p264 = pneg %p84
        %p265 = pneg %p81
        %p266 = pneg %p105
        %p267 = pneg %p102
        %p268 = pneg %p126
        %p269 = pneg %p123
        %p270 = pneg %p154
        %p271 = pneg %p151
        %s272 = sand.u32 %s141, 1
        %s273 = scalar_lea.sflag [#allocation4], %s272
        %s274 = sand.u32 %s141, 1
        %s275 = smul.addr %s274, 16
        %s276 = scalar_lea.vmem [#allocation9], %s275
        %s277 = smul.u32 2, %s28
        %s278 = smul.u32 2, %s28
        %p279 = scmp.lt.s32.totalorder %s278, 1
        %s280 = scalar_select %p279, %s278, 1
        %s281 = smul.addr %s280, 4
        %s282 = scalar_lea.vmem %s1, %s281
        %s283 = smul.u32 2, %s28
        %s284 = smul.u32 2, %s28
        %v285 = vld [vmem:[%s235] sm:$0xff]
        %s286 = sld [smem:[#allocation6]]
        %v287 = vstv %s286
        %v288 = vmul.f32 %v285, %v287
        %s289 = sld [smem:[#allocation6 + $0x1]]
        %v290 = vstv %s289
        %v291 = vmul.f32 %v285, %v290
        %v293 = vrot.slane %v291, 5
        %v294 = vrot.slane %v293, 4
        %v296 = vadd.f32 %v288, %v294
        %s297 = sld [smem:[#allocation6 + $0x2]]
        %v298 = vstv %s297
        %v299 = vmul.f32 %v285, %v298
        %v301 = vrot.slane %v299, 6
        %v302 = vrot.slane %v301, 4
        %v304 = vadd.f32 %v296, %v302
        %s305 = sld [smem:[#allocation6 + $0x3]]
        %v306 = vstv %s305
        %v307 = vmul.f32 %v285, %v306
        %v309 = vrot.slane %v307, 7
        %v310 = vrot.slane %v309, 4
        %v312 = vadd.f32 %v304, %v310
        %s313 = sld [smem:[#allocation7]]
        %v314 = vstv %s313
        %v315 = vadd.f32 %v312, %v314
        %s316 = sld [smem:[#allocation6 + $0x80]]
        %v317 = vstv %s316
        %v318 = vmul.f32 %v285, %v317
        %s319 = sld [smem:[#allocation6 + $0x81]]
        %v320 = vstv %s319
        %v321 = vmul.f32 %v285, %v320
        %v323 = vrot.slane %v321, 5
        %v324 = vrot.slane %v323, 4
        %v326 = vadd.f32 %v318, %v324
        %s327 = sld [smem:[#allocation6 + $0x82]]
        %v328 = vstv %s327
        %v329 = vmul.f32 %v285, %v328
        %v331 = vrot.slane %v329, 6
        %v332 = vrot.slane %v331, 4
        %v334 = vadd.f32 %v326, %v332
        %s335 = sld [smem:[#allocation6 + $0x83]]
        %v336 = vstv %s335
        %v337 = vmul.f32 %v285, %v336
        %v339 = vrot.slane %v337, 7
        %v340 = vrot.slane %v339, 4
        %v342 = vadd.f32 %v334, %v340
        %s343 = sld [smem:[#allocation7 + $0x1]]
        %v344 = vstv %s343
        %v345 = vadd.f32 %v342, %v344
        %s346 = sld [smem:[#allocation6 + $0x100]]
        %v347 = vstv %s346
        %v348 = vmul.f32 %v285, %v347
        %s349 = sld [smem:[#allocation6 + $0x101]]
        %v350 = vstv %s349
        %v351 = vmul.f32 %v285, %v350
        %v353 = vrot.slane %v351, 5
        %v354 = vrot.slane %v353, 4
        %v356 = vadd.f32 %v348, %v354
        %s357 = sld [smem:[#allocation6 + $0x102]]
        %v358 = vstv %s357
        %v359 = vmul.f32 %v285, %v358
        %v361 = vrot.slane %v359, 6
        %v362 = vrot.slane %v361, 4
        %v364 = vadd.f32 %v356, %v362
        %s365 = sld [smem:[#allocation6 + $0x103]]
        %v366 = vstv %s365
        %v367 = vmul.f32 %v285, %v366
        %v369 = vrot.slane %v367, 7
        %v370 = vrot.slane %v369, 4
        %v372 = vadd.f32 %v364, %v370
        %s373 = sld [smem:[#allocation7 + $0x2]]
        %v374 = vstv %s373
        %v375 = vadd.f32 %v372, %v374
        %s376 = sld [smem:[#allocation6 + $0x180]]
        %v377 = vstv %s376
        %v378 = vmul.f32 %v285, %v377
        %s379 = sld [smem:[#allocation6 + $0x181]]
        %v380 = vstv %s379
        %v381 = vmul.f32 %v285, %v380
        %v383 = vrot.slane %v381, 5
        %v384 = vrot.slane %v383, 4
        %v386 = vadd.f32 %v378, %v384
        %s387 = sld [smem:[#allocation6 + $0x182]]
        %v388 = vstv %s387
        %v389 = vmul.f32 %v285, %v388
        %v391 = vrot.slane %v389, 6
        %v392 = vrot.slane %v391, 4
        %v394 = vadd.f32 %v386, %v392
        %s395 = sld [smem:[#allocation6 + $0x183]]
        %v396 = vstv %s395
        %v397 = vmul.f32 %v285, %v396
        %v399 = vrot.slane %v397, 7
        %v400 = vrot.slane %v399, 4
        %v402 = vadd.f32 %v394, %v400
        %s403 = sld [smem:[#allocation7 + $0x3]]
        %v404 = vstv %s403
        %v405 = vadd.f32 %v402, %v404
        %s406 = sld [smem:[#allocation6 + $0x200]]
        %v407 = vstv %s406
        %v408 = vmul.f32 %v285, %v407
        %s409 = sld [smem:[#allocation6 + $0x201]]
        %v410 = vstv %s409
        %v411 = vmul.f32 %v285, %v410
        %v413 = vrot.slane %v411, 5
        %v414 = vrot.slane %v413, 4
        %v416 = vadd.f32 %v408, %v414
        %s417 = sld [smem:[#allocation6 + $0x202]]
        %v418 = vstv %s417
        %v419 = vmul.f32 %v285, %v418
        %v421 = vrot.slane %v419, 6
        %v422 = vrot.slane %v421, 4
        %v424 = vadd.f32 %v416, %v422
        %s425 = sld [smem:[#allocation6 + $0x203]]
        %v426 = vstv %s425
        %v427 = vmul.f32 %v285, %v426
        %v429 = vrot.slane %v427, 7
        %v430 = vrot.slane %v429, 4
        %v432 = vadd.f32 %v424, %v430
        %s433 = sld [smem:[#allocation7 + $0x4]]
        %v434 = vstv %s433
        %v435 = vadd.f32 %v432, %v434
        %v436 = vtanh.pop %v315
        %v437 = vmul.f32 %v436, 3.0
        %v438 = vtanh.pop %v345
        %v439 = vmul.f32 %v438, 3.0
        %v440 = vtanh.pop %v375
        %v441 = vmul.f32 %v440, 3.0
        %v442 = vtanh.pop %v405
        %v443 = vmul.f32 %v442, 3.0
        %v444 = vld [vmem:[%s282] ss:$4 sm:$0x3]
        %s445 = scalar_lea.vmem %s282, 1
        %v446 = vld [vmem:[%s445] ss:$4 sm:$0x3]
        %s447 = scalar_lea.vmem %s282, 2
        %v448 = vld [vmem:[%s447] ss:$4 sm:$0x3]
        %s449 = scalar_lea.vmem %s282, 3
        %v450 = vld [vmem:[%s449] ss:$4 sm:$0x3]
        %v452 = vrot.slane %v437, 3
        %vm453 = vcmask 1040384
        %v454 = vsel %vm453, %v437, %v452
        %v456 = vadd.f32 %v444, %v454
        %v457 = vmax.f32 %v456, 0.0
        %v458 = vmin.f32 %v457, 16.0
        %v460 = vrot.slane %v439, 3
        %v461 = vsel %vm453, %v439, %v460
        %v463 = vadd.f32 %v446, %v461
        %v464 = vmax.f32 %v463, 0.0
        %v465 = vmin.f32 %v464, 16.0
        %v467 = vrot.slane %v441, 3
        %v468 = vsel %vm453, %v441, %v467
        %v470 = vadd.f32 %v448, %v468
        %v471 = vmax.f32 %v470, 0.0
        %v472 = vmin.f32 %v471, 16.0
        %v474 = vrot.slane %v443, 3
        %v475 = vsel %vm453, %v443, %v474
        %v477 = vadd.f32 %v450, %v475
        %v478 = vmax.f32 %v477, 0.0
        %v479 = vmin.f32 %v478, 16.0
        %v480 = vmin.f32 %v458, %v472
        %v481 = vmax.f32 %v458, %v472
        %v482 = vmin.f32 %v465, %v479
        %v483 = vmax.f32 %v465, %v479
        %v484 = vsub.f32 0.0, %v435
        %v485 = vmul.f32 %v484, 1.442695
        %v486 = vpow.pop %v485
        %v487 = vadd.f32 %v486, 1.0
        %v488 = vrcp.pop %v487
        %v489 = vmul.f32 %v487, %v488
        %v490 = vsub.f32 1.0, %v489
        %v491 = vmul.f32 %v488, %v490
        %v492 = vadd.f32 %v488, %v491
        %vm493 = vweird.f32 %v487
        %vm494 = vweird.f32 %v488
        %vm495 = vmor %vm493, %vm494
        %v496 = vsel %vm495, %v488, %v492
        %v497 = vand.u32 2147483647, %v487
        %vm498 = vcmp.eq.f32.partialorder %v497, 8.507059e+37
        %v499 = vand.u32 %v487, 2147483648
        %v500 = vor.u32 1.1754944e-38, %v499
        %v501 = vsel %vm498, %v500, %v496
        %v502 = vmul.f32 1.0, %v501
        %v503 = vsub.f32 %v481, %v480
        %v504 = vsub.f32 %v483, %v482
        %vm505 = vcmp.ge.f32.partialorder %v503, 5.0
        %vm506 = vcmp.ge.f32.partialorder %v504, 5.0
        %vm507 = vmand %vm505, %vm506
        %vm508 = vcmp.ge.f32.partialorder %v502, 0.001
        %v509 = vsel %vm508, 1, 0
        %v510 = vrot.slane %v509, 3
        %v511 = vsel %vm453, %v509, %v510
        %vm512 = vcmp.ne.s32.totalorder %v511, 0
        %vm513 = vmand %vm507, %vm512
        %v514 = vsel %vm513, 1.0, 0.0
        %v515 = vlaneseq
        %vm516 = vcmp.ge.s32.totalorder %v515, 0
        %vm517 = vcmp.lt.s32.totalorder %v515, 256
        %vm518 = vmand %vm516, %vm517
        %519 = vst.msk [vmem:[%s276] ss:$8 sm:$0x3] %vm518, %v480
        %520 = vst.msk [vmem:[%s276] ss:$8 sm:$0x0] %vm518, %v480
        %s521 = scalar_lea.vmem %s276, 1 [#allocation9]
        %522 = vst.msk [vmem:[%s521] ss:$8 sm:$0x3] %vm518, %v482
        %523 = vst.msk [vmem:[%s521] ss:$8 sm:$0x0] %vm518, %v482
        %s524 = scalar_lea.vmem %s276, 2 [#allocation9]
        %525 = vst.msk [vmem:[%s524] ss:$8 sm:$0x3] %vm518, %v481
        %526 = vst.msk [vmem:[%s524] ss:$8 sm:$0x0] %vm518, %v481
        %s527 = scalar_lea.vmem %s276, 3 [#allocation9]
        %528 = vst.msk [vmem:[%s527] ss:$8 sm:$0x3] %vm518, %v483
        %529 = vst.msk [vmem:[%s527] ss:$8 sm:$0x0] %vm518, %v483
        %v531 = vrot.slane %v502, 3
        %v532 = vsel %vm453, %v502, %v531
        %s534 = scalar_lea.vmem %s276, 4 [#allocation9]
        %535 = vst.msk [vmem:[%s534] ss:$8 sm:$0x3] %vm518, %v532
        %536 = vst.msk [vmem:[%s534] ss:$8 sm:$0x0] %vm518, %v532
        %s537 = scalar_lea.vmem %s276, 5 [#allocation9]
        %538 = vst.msk [vmem:[%s537] ss:$8 sm:$0x3] %vm518, %v514
        %539 = vst.msk [vmem:[%s537] ss:$8 sm:$0x0] %vm518, %v514
        %540 = vst [vmem:[%s276] sm:$0xc0] 0.0
        %541 = vst [vmem:[%s276 + $0x8] sm:$0xc0] 0.0
        %s542 = sand.u32 %s141, 1
        %s543 = scalar_lea.sflag [#allocation4], %s542
        %s544 = sand.u32 %s141, 1
        %s545 = smul.addr %s544, 16
        %s546 = scalar_lea.vmem [#allocation9], %s545
        // Predicated region
        $region49: #{tpu_custom_call.1} parent=35 // pred_check
          %p547 = pneg %p151
        $region50: #{tpu_custom_call.1} parent=35 // pred_check_branch
          %549 = sbr.rel (%p547) target = $region52
        $region51: #{tpu_custom_call.1} parent=35 // pred_region
          %s550 = smul.u32 2, %s28
          %552 = vsyncadd %s543, 0
          %s553 = smul.addr %s27, 2
          %s554 = sadd.s32 %s550, %s553
          %s555 = smul.addr %s554, 8
          %s556 = scalar_lea.hbm %s4, %s555
          %s558 = sshll.u32 %s546, 4
          %s559 = int_to_ptr.vmem [resolvable:$true] %s558
          %s560 = sshll.u32 %s556, 4
          %s561 = int_to_ptr.hbm [resolvable:$true] %s560
          %563 = dma.vmem_to_hbm [thread:$0]  %s559, 256, %s561, %s543
        $region52: #{tpu_custom_call.1} parent=35 // pred_fallthru
          _
      $region36: #{tpu_custom_call.1} parent=5 // pred_fallthru
        _
      %p564 = scmp.le.s32.totalorder 2, %s18
      // Predicated region
      $region53: #{tpu_custom_call.1} parent=5 // pred_check
        %p565 = pneg %p564
      $region54: #{tpu_custom_call.1} parent=5 // pred_check_branch
        %567 = sbr.rel (%p565) target = $region56
      $region55: #{tpu_custom_call.1} parent=5 // pred_region
        %s568 = ssub.s32 %s18, 2
        // Predicated region
        $region57: #{tpu_custom_call.1} parent=55 // pred_check
          %p569 = pneg %p157
        $region58: #{tpu_custom_call.1} parent=55 // pred_check_branch
          %571 = sbr.rel (%p569) target = $region60
        $region59: #{tpu_custom_call.1} parent=55 // pred_region
          %s572 = sand.u32 %s142, 1
          %s573 = scalar_lea.sflag [#allocation4], %s572
          %s574 = sand.u32 %s142, 1
          %s575 = smul.addr %s574, 16
          %s576 = scalar_lea.vmem [#allocation9], %s575
          %578 = dma.done %s573, 256
        $region60: #{tpu_custom_call.1} parent=55 // pred_fallthru
          _
      $region56: #{tpu_custom_call.1} parent=5 // pred_fallthru
        _
    $region6: #{tpu_custom_call.1} parent=1 // loop_footer
      %s22 = sadd.s32 1, %s18
    $region7: #{tpu_custom_call.1} parent=1 // loop_footer_branch
      %17 = sbr.rel target = $region3
    $region8: #{tpu_custom_call.1} parent=1 // loop_exit
      _
    %579 = vsyncpa [#allocation3], 1
    %s580 = scalar_lea.sflag [#allocation3], 1
    %581 = vsyncpa %s580, 1
    %582 = vsyncpa [#allocation4], 1
    %s583 = scalar_lea.sflag [#allocation4], 1
    %584 = vsyncpa %s583, 1
    %585 = vsyncpa [#allocation5], 1
    %s586 = scalar_lea.sflag [#allocation5], 1
    %587 = vsyncpa %s586, 1
    %588 = vsyncpa [#allocation8], 1

</llo_original>
